<compile_context>
chip_gen: v7x
topology: tpu7x:2x2x1
jax: 0.10.0
libtpu: 0.0.40
codegen_flags: <defaults>
</compile_context>

<pallas_src>
import math
import jax
import jax.numpy as jnp
from jax import lax
from jax.experimental import pallas as pl
from jax.experimental.pallas import tpu as pltpu

_INV_SQRT8 = 1.0 / math.sqrt(8.0)
_D_IN = 48         # in_features of k/q/v
_D_H = 8           # out_features of k/q/v (attention head dim)
_SLAB_ROWS = 64    # param slab rows, padded to a sublane multiple


# ----------------------------- Pallas kernel --------------------------------

def ultimus_kernel(x_ref, p_ref, o_ref):
    # x_ref: (B, 48) activations.
    # p_ref: (64, 48) packed parameter slab (single DMA):
    #   rows  0:48, cols 0:24  -> [Wk | Wq | Wv]  stored [in, out]
    #   rows 48:56, cols 0:48  -> Wz * (1/sqrt(8))   (scale folded in)
    #   row  56,    cols 0:24  -> [bk | bq | bv]
    #   row  57,    cols 0:48  -> bz
    # o_ref: (B, 48) output (residual included); aliases x's HBM buffer.
    x = x_ref[...]
    slab = p_ref[...]                       # tiny (12 KB) -> a few vregs

    w_kqv = slab[0:_D_IN, 0:3 * _D_H]
    w_z   = slab[_D_IN:_D_IN + _D_H, :]
    b_kqv = slab[56:57, 0:3 * _D_H]
    b_z   = slab[57:58, :]

    # One fused MXU matmul for the three projections.
    kqv = jnp.dot(x, w_kqv, preferred_element_type=jnp.float32) + b_kqv
    xk = kqv[:, 0 * _D_H:1 * _D_H]
    xq = kqv[:, 1 * _D_H:2 * _D_H]
    xv = kqv[:, 2 * _D_H:3 * _D_H]

    # scores = x_k @ x_q^T  -> (B, B)   (attention mixes across the batch dim)
    s = lax.dot_general(xk, xq, (((1,), (1,)), ((), ())),
                        preferred_element_type=jnp.float32)

    # Numerically stable softmax over dim=1.  The module's /sqrt(8) is folded
    # into w_z above; the divide is an EUP approx reciprocal (co-issues freely).
    s_max = jnp.max(s, axis=1, keepdims=True)
    e = jnp.exp(s - s_max)
    am = e * pl.reciprocal(jnp.sum(e, axis=1, keepdims=True), approx=True)

    z = jnp.dot(am, xv, preferred_element_type=jnp.float32)                 # (B, 8)
    out = jnp.dot(z, w_z, preferred_element_type=jnp.float32) + b_z         # (B, 48)
    o_ref[...] = x + out                                                    # residual


# --------------------------- parameter packing -------------------------------

def pack_params(p):
    """Fuse + pad all Linear params into one lane-dense slab.

    Called ONCE at init (NOT on the per-forward path), so no per-call
    concatenate/reshape XLA ops and a single param DMA per kernel call.
    """
    w_kqv = jnp.concatenate([p["k_w"], p["q_w"], p["v_w"]], axis=1)   # (48, 24)
    b_kqv = jnp.concatenate([p["k_b"], p["q_b"], p["v_b"]])           # (24,)
    w_z = p["z_w"] * _INV_SQRT8        # fold the post-softmax 1/sqrt(8) scale
    b_z = p["z_b"]                                                    # (48,)

    slab = jnp.zeros((_SLAB_ROWS, _D_IN), jnp.float32)
    slab = slab.at[0:_D_IN, 0:3 * _D_H].set(w_kqv)
    slab = slab.at[_D_IN:_D_IN + _D_H, :].set(w_z)
    slab = slab.at[56, 0:3 * _D_H].set(b_kqv)
    slab = slab.at[57, :].set(b_z)
    return slab


# ----------------------------- Pallas wrapper --------------------------------

def ultimus_forward(x, packed_params):
    """x: (B, 48) float32, packed_params: (64, 48) float32 -> (B, 48) float32."""
    B = x.shape[0]

    flops = 2 * (B * _D_IN * 3 * _D_H + 2 * B * B * _D_H + B * _D_H * _D_IN)
    bytes_accessed = 4 * (2 * B * _D_IN + packed_params.size)
    cost = pl.CostEstimate(flops=flops, transcendentals=B * B,
                           bytes_accessed=bytes_accessed)

    vmem_spec = pl.BlockSpec(memory_space=pltpu.MemorySpace.VMEM)
    # No grid: the whole (tiny) problem is one VMEM-resident block.  For large B
    # (or many independent instances) this should become a query-tiled grid with
    # dimension_semantics=("parallel", ...) and an online-softmax accumulator.
    return pl.pallas_call(
        ultimus_kernel,
        out_shape=jax.ShapeDtypeStruct((B, _D_IN), jnp.float32),
        in_specs=[vmem_spec, vmem_spec],
        out_specs=vmem_spec,
        input_output_aliases={0: 0},     # residual output can reuse x's buffer
        cost_estimate=cost,
    )(x, packed_params)


# --------------------------- pure-JAX reference ------------------------------

def reference_forward(x, p):
    xk = x @ p["k_w"] + p["k_b"]
    xq = x @ p["q_w"] + p["q_b"]
    xv = x @ p["v_w"] + p["v_b"]
    am = jax.nn.softmax(xk @ xq.T, axis=1) * _INV_SQRT8
    z = am @ xv
    return x + (z @ p["z_w"] + p["z_b"])


# ----------------------------- parameter init --------------------------------

def init_params(key):
    keys = iter(jax.random.split(key, 16))

    def nrm(shape, s):
        return (s * jax.random.normal(next(keys), shape)).astype(jnp.float32)

    p = {}
    for name, (fin, fout) in [("k", (_D_IN, _D_H)), ("q", (_D_IN, _D_H)),
                              ("v", (_D_IN, _D_H)), ("z", (_D_H, _D_IN))]:
        p[f"{name}_w"] = nrm((fin, fout), 1.0 / math.sqrt(fin))   # stored [in, out]
        p[f"{name}_b"] = nrm((fout,), 0.05)
    return p


# ---------------------------------- main --------------------------------------

if __name__ == "__main__":
    key = jax.random.PRNGKey(0)
    kx, kp = jax.random.split(key)

    # Attention mixes across the batch dimension (x_k @ x_q^T) -> use B > 1;
    # B=8 matches the TPU sublane count.
    B = 8
    x = jax.random.normal(kx, (B, _D_IN), dtype=jnp.float32)
    params = init_params(kp)
    packed = pack_params(params)          # one-time packing, outside forward

    ref = reference_forward(x, params)    # compute reference before the aliased call

    out = jax.jit(ultimus_forward)(x, packed)
    out = jax.block_until_ready(out)

    assert out.shape == (B, _D_IN)
    assert jnp.allclose(out, ref, atol=2e-3, rtol=2e-3), "Pallas output mismatch vs reference"

    print("KERNEL_OK")
</pallas_src>

<mosaic_0001>
module attributes {stable_mosaic.version = 11 : i64} {
  func.func @ultimus_kernel(%arg0: memref<8x48xf32, #tpu.memory_space<vmem>>, %arg1: memref<64x48xf32, #tpu.memory_space<vmem>>, %arg2: memref<8x48xf32, #tpu.memory_space<vmem>>) attributes {dimension_semantics = [], scalar_prefetch = 0 : i64, scratch_operands = 0 : i64, tpu.core_type = #tpu.core_type<tc>} {
    %c0 = arith.constant 0 : index
    %c0_0 = arith.constant 0 : index
    %0 = vector.load %arg0[%c0, %c0_0] : memref<8x48xf32, #tpu.memory_space<vmem>>, vector<8x48xf32>
    %c0_1 = arith.constant 0 : index
    %c0_2 = arith.constant 0 : index
    %1 = vector.load %arg1[%c0_1, %c0_2] : memref<64x48xf32, #tpu.memory_space<vmem>>, vector<64x48xf32>
    %2 = vector.extract_strided_slice %1 {offsets = [0, 0], sizes = [48, 24], strides = [1, 1]} : vector<64x48xf32> to vector<48x24xf32>
    %3 = vector.extract_strided_slice %1 {offsets = [48, 0], sizes = [8, 48], strides = [1, 1]} : vector<64x48xf32> to vector<8x48xf32>
    %4 = vector.extract_strided_slice %1 {offsets = [56, 0], sizes = [1, 24], strides = [1, 1]} : vector<64x48xf32> to vector<1x24xf32>
    %5 = vector.extract_strided_slice %1 {offsets = [57, 0], sizes = [1, 48], strides = [1, 1]} : vector<64x48xf32> to vector<1x48xf32>
    %cst = arith.constant dense<0.000000e+00> : vector<8x24xf32>
    %6 = tpu.matmul %0, %2, %cst {dimension_numbers = #tpu.dot_dimension_numbers<[1], [0], [0], [1], [0, 0, 1, 1], [], []>} : vector<8x48xf32>, vector<48x24xf32>, vector<8x24xf32> -> vector<8x24xf32>
    %7 = vector.broadcast %4 : vector<1x24xf32> to vector<8x24xf32>
    %8 = arith.addf %6, %7 : vector<8x24xf32>
    %9 = vector.extract_strided_slice %8 {offsets = [0, 0], sizes = [8, 8], strides = [1, 1]} : vector<8x24xf32> to vector<8x8xf32>
    %10 = vector.extract_strided_slice %8 {offsets = [0, 8], sizes = [8, 8], strides = [1, 1]} : vector<8x24xf32> to vector<8x8xf32>
    %11 = vector.extract_strided_slice %8 {offsets = [0, 16], sizes = [8, 8], strides = [1, 1]} : vector<8x24xf32> to vector<8x8xf32>
    %cst_3 = arith.constant dense<0.000000e+00> : vector<8x8xf32>
    %12 = tpu.matmul %9, %10, %cst_3 {dimension_numbers = #tpu.dot_dimension_numbers<[1], [1], [0], [0], [0, 0, 1, 0], [], []>} : vector<8x8xf32>, vector<8x8xf32>, vector<8x8xf32> -> vector<8x8xf32>
    %cst_4 = arith.constant dense<0xFF800000> : vector<8xf32>
    %13 = vector.multi_reduction <maximumf>, %12, %cst_4 [1] : vector<8x8xf32> to vector<8xf32>
    %14 = vector.shape_cast %13 : vector<8xf32> to vector<8x1xf32>
    %15 = vector.broadcast %14 : vector<8x1xf32> to vector<8x8xf32>
    %16 = arith.subf %12, %15 : vector<8x8xf32>
    %17 = math.exp %16 : vector<8x8xf32>
    %cst_5 = arith.constant dense<0.000000e+00> : vector<8xf32>
    %18 = vector.multi_reduction <add>, %17, %cst_5 [1] : vector<8x8xf32> to vector<8xf32>
    %19 = vector.shape_cast %18 : vector<8xf32> to vector<8x1xf32>
    %20 = tpu.reciprocal %19 {approx = true} : vector<8x1xf32> -> vector<8x1xf32>
    %21 = vector.broadcast %20 : vector<8x1xf32> to vector<8x8xf32>
    %22 = arith.mulf %17, %21 : vector<8x8xf32>
    %cst_6 = arith.constant dense<0.000000e+00> : vector<8x8xf32>
    %23 = tpu.matmul %22, %11, %cst_6 {dimension_numbers = #tpu.dot_dimension_numbers<[1], [0], [0], [1], [0, 0, 1, 1], [], []>} : vector<8x8xf32>, vector<8x8xf32>, vector<8x8xf32> -> vector<8x8xf32>
    %cst_7 = arith.constant dense<0.000000e+00> : vector<8x48xf32>
    %24 = tpu.matmul %23, %3, %cst_7 {dimension_numbers = #tpu.dot_dimension_numbers<[1], [0], [0], [1], [0, 0, 1, 1], [], []>} : vector<8x8xf32>, vector<8x48xf32>, vector<8x48xf32> -> vector<8x48xf32>
    %25 = vector.broadcast %5 : vector<1x48xf32> to vector<8x48xf32>
    %26 = arith.addf %24, %25 : vector<8x48xf32>
    %27 = arith.addf %0, %26 : vector<8x48xf32>
    %c0_8 = arith.constant 0 : index
    %c0_9 = arith.constant 0 : index
    %28 = vector.load %arg2[%c0_8, %c0_9] : memref<8x48xf32, #tpu.memory_space<vmem>>, vector<8x48xf32>
    tpu.vector_store %arg2[%c0_8, %c0_9], %27 {strides = array<i32>} : memref<8x48xf32, #tpu.memory_space<vmem>>, vector<8x48xf32>,
    return
  }
}

</mosaic_0001>

<llo_original>
// kernel: ultimus_forward.1
$region0: #{ultimus_forward.1}
  #allocation0 [shape = 'u32[]', space=smem, size = 0x4, offset = 0x4, fixed_abs, tag = 'smem constant byte address 0x4 - core index']
  #allocation1 [shape = 'u32[144,128]{1,0:T(1,128)}', space=vmem, size = 0x12000, scoped, tag = 'internal scratch']
  %s0 = inlined_call_operand.hbm [shape: f32[8,48], index: 0, kind: input, shape index: {}, may-alias: {0,2}]
  %s1 = inlined_call_operand.vmem [shape: f32[64,48], index: 1, kind: input, shape index: {}]
  %s2 = inlined_call_operand.hbm [shape: f32[8,48], index: 2, kind: output, shape index: {}, may-alias: {0,2}]
  %s3 = sld [smem:[#allocation0]]
  $region22: #{ultimus_forward.1} parent=0
    _
  %s5 = ssub.s32 1, %s3
  %s6 = scalar_select 0, %s5, %s3
  $region1: #{ultimus_forward.1} parent=0
    #allocation2 [shape = 'u8[4096]{0}', space=vmem, size = 0x1000, scoped, tag = 'input window, operand 0, single buffered']
    #allocation3 [shape = 's32[1]{0}', space=sflag, size = 0x4, scoped, tag = 'scoped memory for ultimus_forward.1']
    #allocation4 [shape = 's32[1]{0}', space=sflag, size = 0x4, scoped, tag = 'scoped memory for ultimus_forward.1']
    #allocation5 [shape = 'u8[4096]{0}', space=vmem, size = 0x1000, scoped, tag = 'output window, operand 0, single buffered']
    %7 = vsyncpa [#allocation3], 0
    %8 = vsyncpa [#allocation4], 0
    // Predicated region
    $region2: #{ultimus_forward.1} parent=1 // pred_check
      _
    $region3: #{ultimus_forward.1} parent=1 // pred_check_branch
      %10 = sbr.rel (0) target = $region5
    $region4: #{ultimus_forward.1} parent=1 // pred_region
      %s12 = ssub.s32 128, 128
      %13 = vsyncadd [#allocation3], %s12
      %s15 = sshll.u32 [#allocation2], 4
      %s16 = int_to_ptr.vmem [resolvable:$true] %s15
      %18 = dma.hbm_to_vmem [thread:$0]  %s0, 128, %s16, [#allocation3]
    $region5: #{ultimus_forward.1} parent=1 // pred_fallthru
      _
    // Predicated region
    $region6: #{ultimus_forward.1} parent=1 // pred_check
      _
    $region7: #{ultimus_forward.1} parent=1 // pred_check_branch
      %20 = sbr.rel (0) target = $region9
    $region8: #{ultimus_forward.1} parent=1 // pred_region
      _
    $region9: #{ultimus_forward.1} parent=1 // pred_fallthru
      _
    // Predicated region
    $region10: #{ultimus_forward.1} parent=1 // pred_check
      _
    $region11: #{ultimus_forward.1} parent=1 // pred_check_branch
      %22 = sbr.rel (0) target = $region13
    $region12: #{ultimus_forward.1} parent=1 // pred_region
      %23 = dma.done [#allocation3], 128
    $region13: #{ultimus_forward.1} parent=1 // pred_fallthru
      _
    %v24 = vld [vmem:[#allocation2] sm:$0xff]
    %v25 = vld [vmem:[%s1] sm:$0xff]
    %v26 = vld [vmem:[%s1 + $0x8] sm:$0xff]
    %v27 = vld [vmem:[%s1 + $0x10] sm:$0xff]
    %v28 = vld [vmem:[%s1 + $0x18] sm:$0xff]
    %v29 = vld [vmem:[%s1 + $0x20] sm:$0xff]
    %v30 = vld [vmem:[%s1 + $0x28] sm:$0xff]
    %v31 = vld [vmem:[%s1 + $0x30] sm:$0xff]
    %v32 = vld [vmem:[%s1 + $0x38] sm:$0xff]
    %v33 = vlaneseq
    %v34 = vshrl.u32 %v33, 7
    %v35 = vsub.s32 0, %v34
    %v36 = vrot.slane %v32, %v35
    %vm37 = vcmask 392192
    %v39 = vsel %vm37, %v24, 0
    %41 = vmatprep.subr.mxu0 0.0
    %42 = vmatpush1.msra.mxu0 %v25
    %43 = vmatprep.subr.mxu0 0.0
    %44 = vmatpush1.msra.mxu0 %v26
    %45 = vmatprep.subr.mxu0 0.0
    %46 = vmatpush1.msra.mxu0 %v27
    %47 = vmatprep.subr.mxu0 0.0
    %48 = vmatpush1.msra.mxu0 %v28
    %49 = vmatprep.subr.mxu0 0.0
    %50 = vmatpush1.msra.mxu0 %v29
    %51 = vmatprep.subr.mxu0 0.0
    %52 = vmatpush1.msra.mxu0 %v30
    %53 = vmatprep.subr.mxu0 0.0
    %54 = vmatpush1.msra.mxu0 0.0
    %55 = vmatprep.subr.mxu0 0.0
    %56 = vmatpush1.msra.mxu0 0.0
    %57 = vmatprep.subr.mxu0 0.0
    %58 = vmatpush1.msra.mxu0 0.0
    %59 = vmatprep.subr.mxu0 0.0
    %60 = vmatpush1.msra.mxu0 0.0
    %61 = vmatprep.subr.mxu0 0.0
    %62 = vmatpush1.msra.mxu0 0.0
    %63 = vmatprep.subr.mxu0 0.0
    %64 = vmatpush1.msra.mxu0 0.0
    %65 = vmatprep.subr.mxu0 0.0
    %66 = vmatpush1.msra.mxu0 0.0
    %67 = vmatprep.subr.mxu0 0.0
    %68 = vmatpush1.msra.mxu0 0.0
    %69 = vmatprep.subr.mxu0 0.0
    %70 = vmatpush1.msra.mxu0 0.0
    %71 = vmatprep.subr.mxu0 0.0
    %72 = vmatpush1.msra.mxu0 0.0
    %73 = vmatprep.subr.mxu0 0.0
    %74 = vmatpush1.msra.mxu0 0.0
    %75 = vmatprep.subr.mxu0 0.0
    %76 = vmatpush1.msra.mxu0 0.0
    %77 = vmatprep.subr.mxu0 0.0
    %78 = vmatpush1.msra.mxu0 0.0
    %79 = vmatprep.subr.mxu0 0.0
    %80 = vmatpush1.msra.mxu0 0.0
    %81 = vmatprep.subr.mxu0 0.0
    %82 = vmatpush1.msra.mxu0 0.0
    %83 = vmatprep.subr.mxu0 0.0
    %84 = vmatpush1.msra.mxu0 0.0
    %85 = vmatprep.subr.mxu0 0.0
    %86 = vmatpush1.msra.mxu0 0.0
    %87 = vmatprep.subr.mxu0 0.0
    %88 = vmatpush1.msra.mxu0 0.0
    %89 = vmatprep.subr.mxu0 0.0
    %90 = vmatpush1.msra.mxu0 0.0
    %91 = vmatprep.subr.mxu0 0.0
    %92 = vmatpush1.msra.mxu0 0.0
    %93 = vmatprep.subr.mxu0 0.0
    %94 = vmatpush1.msra.mxu0 0.0
    %95 = vmatprep.subr.mxu0 0.0
    %96 = vmatpush1.msra.mxu0 0.0
    %97 = vmatprep.subr.mxu0 0.0
    %98 = vmatpush1.msra.mxu0 0.0
    %99 = vmatprep.subr.mxu0 0.0
    %100 = vmatpush1.msra.mxu0 0.0
    %101 = vmatprep.subr.mxu0 0.0
    %102 = vmatpush1.msra.mxu0 0.0
    %103 = vmatprep.subr.mxu0 0.0
    %104 = vmatpush1.msra.mxu0 0.0
    %105 = vmatprep.mubr.f32.mxu0 0.0
    %106 = vmatmul.mubr.f32.gmra.mrb[0].mxu0 %v39
    %v107 = vpop.f32.mrb[0].mxu0
    %v108 = vadd.f32 %v36, %v107
    %v109 = vpop.f32.mrb[0].mxu0
    %110 = vdwg.mxu0
    %112 = vrot.lane.b32.xlu0 %v108, 120
    %v113 = vpop.permute.xlu0 %112
    %vm114 = vcmask 64512
    %v115 = vsel %vm114, %v108, 0
    %v117 = vsel %vm114, %v113, 0
    %119 = vmatprep.subr.mxu0 0.0
    %120 = vmatpush1.xpose.msra.mxu0 %v117
    %121 = vmatprep.subr.mxu0 0.0
    %122 = vmatpush1.xpose.msra.mxu0 0.0
    %123 = vmatprep.subr.mxu0 0.0
    %124 = vmatpush1.xpose.msra.mxu0 0.0
    %125 = vmatprep.subr.mxu0 0.0
    %126 = vmatpush1.xpose.msra.mxu0 0.0
    %127 = vmatprep.subr.mxu0 0.0
    %128 = vmatpush1.xpose.msra.mxu0 0.0
    %129 = vmatprep.subr.mxu0 0.0
    %130 = vmatpush1.xpose.msra.mxu0 0.0
    %131 = vmatprep.subr.mxu0 0.0
    %132 = vmatpush1.xpose.msra.mxu0 0.0
    %133 = vmatprep.subr.mxu0 0.0
    %134 = vmatpush1.xpose.msra.mxu0 0.0
    %135 = vmatprep.subr.mxu0 0.0
    %136 = vmatpush1.xpose.msra.mxu0 0.0
    %137 = vmatprep.subr.mxu0 0.0
    %138 = vmatpush1.xpose.msra.mxu0 0.0
    %139 = vmatprep.subr.mxu0 0.0
    %140 = vmatpush1.xpose.msra.mxu0 0.0
    %141 = vmatprep.subr.mxu0 0.0
    %142 = vmatpush1.xpose.msra.mxu0 0.0
    %143 = vmatprep.subr.mxu0 0.0
    %144 = vmatpush1.xpose.msra.mxu0 0.0
    %145 = vmatprep.subr.mxu0 0.0
    %146 = vmatpush1.xpose.msra.mxu0 0.0
    %147 = vmatprep.subr.mxu0 0.0
    %148 = vmatpush1.xpose.msra.mxu0 0.0
    %149 = vmatprep.subr.mxu0 0.0
    %150 = vmatpush1.xpose.msra.mxu0 0.0
    %151 = vmatprep.subr.mxu0 0.0
    %152 = vmatpush1.xpose.msra.mxu0 0.0
    %153 = vmatprep.subr.mxu0 0.0
    %154 = vmatpush1.xpose.msra.mxu0 0.0
    %155 = vmatprep.subr.mxu0 0.0
    %156 = vmatpush1.xpose.msra.mxu0 0.0
    %157 = vmatprep.subr.mxu0 0.0
    %158 = vmatpush1.xpose.msra.mxu0 0.0
    %159 = vmatprep.subr.mxu0 0.0
    %160 = vmatpush1.xpose.msra.mxu0 0.0
    %161 = vmatprep.subr.mxu0 0.0
    %162 = vmatpush1.xpose.msra.mxu0 0.0
    %163 = vmatprep.subr.mxu0 0.0
    %164 = vmatpush1.xpose.msra.mxu0 0.0
    %165 = vmatprep.subr.mxu0 0.0
    %166 = vmatpush1.xpose.msra.mxu0 0.0
    %167 = vmatprep.subr.mxu0 0.0
    %168 = vmatpush1.xpose.msra.mxu0 0.0
    %169 = vmatprep.subr.mxu0 0.0
    %170 = vmatpush1.xpose.msra.mxu0 0.0
    %171 = vmatprep.subr.mxu0 0.0
    %172 = vmatpush1.xpose.msra.mxu0 0.0
    %173 = vmatprep.subr.mxu0 0.0
    %174 = vmatpush1.xpose.msra.mxu0 0.0
    %175 = vmatprep.subr.mxu0 0.0
    %176 = vmatpush1.xpose.msra.mxu0 0.0
    %177 = vmatprep.subr.mxu0 0.0
    %178 = vmatpush1.xpose.msra.mxu0 0.0
    %179 = vmatprep.subr.mxu0 0.0
    %180 = vmatpush1.xpose.msra.mxu0 0.0
    %181 = vmatprep.subr.mxu0 0.0
    %182 = vmatpush1.xpose.msra.mxu0 0.0
    %183 = vmatprep.mubr.f32.mxu0 0.0
    %184 = vmatmul.mubr.f32.gmra.mrb[0].mxu0 %v115
    %v185 = vpop.f32.mrb[0].mxu0
    %v186 = vadd.f32 0.0, %v185
    %v187 = vpop.f32.mrb[0].mxu0
    %188 = vdwg.mxu0
    %v189 = vsel %vm114, %v186, -inf
    %190 = vmax.xlane.f32.xlu0 %v189
    %v191 = vpop.xlane.xlu0 %190
    %v192 = vsub.f32 %v186, %v191
    %v193 = vmul.f32 %v192, 1.442695
    %v194 = vpow.pop %v193
    %v195 = vsel %vm114, %v194, 0.0
    %196 = vadd.xlane.f32.xlu0 %v195
    %v197 = vpop.xlane.xlu0 %196
    %v198 = vrcp.pop %v197
    %v199 = vmul.f32 %v194, %v198
    %200 = vrot.lane.b32.xlu0 %v108, 112
    %v201 = vpop.permute.xlu0 %200
    %v204 = vsel %vm114, %v199, 0
    %206 = vmatprep.subr.mxu0 0.0
    %207 = vmatpush1.msra.mxu0 %v201
    %208 = vmatprep.subr.mxu0 0.0
    %209 = vmatpush1.msra.mxu0 0.0
    %210 = vmatprep.subr.mxu0 0.0
    %211 = vmatpush1.msra.mxu0 0.0
    %212 = vmatprep.subr.mxu0 0.0
    %213 = vmatpush1.msra.mxu0 0.0
    %214 = vmatprep.subr.mxu0 0.0
    %215 = vmatpush1.msra.mxu0 0.0
    %216 = vmatprep.subr.mxu0 0.0
    %217 = vmatpush1.msra.mxu0 0.0
    %218 = vmatprep.subr.mxu0 0.0
    %219 = vmatpush1.msra.mxu0 0.0
    %220 = vmatprep.subr.mxu0 0.0
    %221 = vmatpush1.msra.mxu0 0.0
    %222 = vmatprep.subr.mxu0 0.0
    %223 = vmatpush1.msra.mxu0 0.0
    %224 = vmatprep.subr.mxu0 0.0
    %225 = vmatpush1.msra.mxu0 0.0
    %226 = vmatprep.subr.mxu0 0.0
    %227 = vmatpush1.msra.mxu0 0.0
    %228 = vmatprep.subr.mxu0 0.0
    %229 = vmatpush1.msra.mxu0 0.0
    %230 = vmatprep.subr.mxu0 0.0
    %231 = vmatpush1.msra.mxu0 0.0
    %232 = vmatprep.subr.mxu0 0.0
    %233 = vmatpush1.msra.mxu0 0.0
    %234 = vmatprep.subr.mxu0 0.0
    %235 = vmatpush1.msra.mxu0 0.0
    %236 = vmatprep.subr.mxu0 0.0
    %237 = vmatpush1.msra.mxu0 0.0
    %238 = vmatprep.subr.mxu0 0.0
    %239 = vmatpush1.msra.mxu0 0.0
    %240 = vmatprep.subr.mxu0 0.0
    %241 = vmatpush1.msra.mxu0 0.0
    %242 = vmatprep.subr.mxu0 0.0
    %243 = vmatpush1.msra.mxu0 0.0
    %244 = vmatprep.subr.mxu0 0.0
    %245 = vmatpush1.msra.mxu0 0.0
    %246 = vmatprep.subr.mxu0 0.0
    %247 = vmatpush1.msra.mxu0 0.0
    %248 = vmatprep.subr.mxu0 0.0
    %249 = vmatpush1.msra.mxu0 0.0
    %250 = vmatprep.subr.mxu0 0.0
    %251 = vmatpush1.msra.mxu0 0.0
    %252 = vmatprep.subr.mxu0 0.0
    %253 = vmatpush1.msra.mxu0 0.0
    %254 = vmatprep.subr.mxu0 0.0
    %255 = vmatpush1.msra.mxu0 0.0
    %256 = vmatprep.subr.mxu0 0.0
    %257 = vmatpush1.msra.mxu0 0.0
    %258 = vmatprep.subr.mxu0 0.0
    %259 = vmatpush1.msra.mxu0 0.0
    %260 = vmatprep.subr.mxu0 0.0
    %261 = vmatpush1.msra.mxu0 0.0
    %262 = vmatprep.subr.mxu0 0.0
    %263 = vmatpush1.msra.mxu0 0.0
    %264 = vmatprep.subr.mxu0 0.0
    %265 = vmatpush1.msra.mxu0 0.0
    %266 = vmatprep.subr.mxu0 0.0
    %267 = vmatpush1.msra.mxu0 0.0
    %268 = vmatprep.subr.mxu0 0.0
    %269 = vmatpush1.msra.mxu0 0.0
    %270 = vmatprep.mubr.f32.mxu0 0.0
    %271 = vmatmul.mubr.f32.gmra.mrb[0].mxu0 %v204
    %v272 = vpop.f32.mrb[0].mxu0
    %v273 = vadd.f32 0.0, %v272
    %v274 = vpop.f32.mrb[0].mxu0
    %275 = vdwg.mxu0
    %v276 = vlaneseq
    %v277 = vshrl.u32 %v276, 7
    %v278 = vsub.s32 1, %v277
    %v279 = vrot.slane %v32, %v278
    %v281 = vsel %vm114, %v273, 0
    %283 = vmatprep.subr.mxu0 0.0
    %284 = vmatpush1.msra.mxu0 %v31
    %285 = vmatprep.subr.mxu0 0.0
    %286 = vmatpush1.msra.mxu0 0.0
    %287 = vmatprep.subr.mxu0 0.0
    %288 = vmatpush1.msra.mxu0 0.0
    %289 = vmatprep.subr.mxu0 0.0
    %290 = vmatpush1.msra.mxu0 0.0
    %291 = vmatprep.subr.mxu0 0.0
    %292 = vmatpush1.msra.mxu0 0.0
    %293 = vmatprep.subr.mxu0 0.0
    %294 = vmatpush1.msra.mxu0 0.0
    %295 = vmatprep.subr.mxu0 0.0
    %296 = vmatpush1.msra.mxu0 0.0
    %297 = vmatprep.subr.mxu0 0.0
    %298 = vmatpush1.msra.mxu0 0.0
    %299 = vmatprep.subr.mxu0 0.0
    %300 = vmatpush1.msra.mxu0 0.0
    %301 = vmatprep.subr.mxu0 0.0
    %302 = vmatpush1.msra.mxu0 0.0
    %303 = vmatprep.subr.mxu0 0.0
    %304 = vmatpush1.msra.mxu0 0.0
    %305 = vmatprep.subr.mxu0 0.0
    %306 = vmatpush1.msra.mxu0 0.0
    %307 = vmatprep.subr.mxu0 0.0
    %308 = vmatpush1.msra.mxu0 0.0
    %309 = vmatprep.subr.mxu0 0.0
    %310 = vmatpush1.msra.mxu0 0.0
    %311 = vmatprep.subr.mxu0 0.0
    %312 = vmatpush1.msra.mxu0 0.0
    %313 = vmatprep.subr.mxu0 0.0
    %314 = vmatpush1.msra.mxu0 0.0
    %315 = vmatprep.subr.mxu0 0.0
    %316 = vmatpush1.msra.mxu0 0.0
    %317 = vmatprep.subr.mxu0 0.0
    %318 = vmatpush1.msra.mxu0 0.0
    %319 = vmatprep.subr.mxu0 0.0
    %320 = vmatpush1.msra.mxu0 0.0
    %321 = vmatprep.subr.mxu0 0.0
    %322 = vmatpush1.msra.mxu0 0.0
    %323 = vmatprep.subr.mxu0 0.0
    %324 = vmatpush1.msra.mxu0 0.0
    %325 = vmatprep.subr.mxu0 0.0
    %326 = vmatpush1.msra.mxu0 0.0
    %327 = vmatprep.subr.mxu0 0.0
    %328 = vmatpush1.msra.mxu0 0.0
    %329 = vmatprep.subr.mxu0 0.0
    %330 = vmatpush1.msra.mxu0 0.0
    %331 = vmatprep.subr.mxu0 0.0
    %332 = vmatpush1.msra.mxu0 0.0
    %333 = vmatprep.subr.mxu0 0.0
    %334 = vmatpush1.msra.mxu0 0.0
    %335 = vmatprep.subr.mxu0 0.0
    %336 = vmatpush1.msra.mxu0 0.0
    %337 = vmatprep.subr.mxu0 0.0
    %338 = vmatpush1.msra.mxu0 0.0
    %339 = vmatprep.subr.mxu0 0.0
    %340 = vmatpush1.msra.mxu0 0.0
    %341 = vmatprep.subr.mxu0 0.0
    %342 = vmatpush1.msra.mxu0 0.0
    %343 = vmatprep.subr.mxu0 0.0
    %344 = vmatpush1.msra.mxu0 0.0
    %345 = vmatprep.subr.mxu0 0.0
    %346 = vmatpush1.msra.mxu0 0.0
    %347 = vmatprep.mubr.f32.mxu0 0.0
    %348 = vmatmul.mubr.f32.gmra.mrb[0].mxu0 %v281
    %v349 = vpop.f32.mrb[0].mxu0
    %v350 = vadd.f32 %v279, %v349
    %v351 = vpop.f32.mrb[0].mxu0
    %352 = vdwg.mxu0
    %v353 = vadd.f32 %v24, %v350
    %354 = vst.msk [vmem:[#allocation5] sm:$0xff] %vm37, %v353
    // Predicated region
    $region14: #{ultimus_forward.1} parent=1 // pred_check
      _
    $region15: #{ultimus_forward.1} parent=1 // pred_check_branch
      %356 = sbr.rel (0) target = $region17
    $region16: #{ultimus_forward.1} parent=1 // pred_region
      %s358 = ssub.s32 128, 128
      %359 = vsyncadd [#allocation4], %s358
      %s361 = sshll.u32 [#allocation5], 4
      %s362 = int_to_ptr.vmem [resolvable:$true] %s361
      %364 = dma.vmem_to_hbm [thread:$0]  %s362, 128, %s2, [#allocation4]
    $region17: #{ultimus_forward.1} parent=1 // pred_fallthru
      _
    // Predicated region
    $region18: #{ultimus_forward.1} parent=1 // pred_check
      _
    $region19: #{ultimus_forward.1} parent=1 // pred_check_branch
      %366 = sbr.rel (0) target = $region21
    $region20: #{ultimus_forward.1} parent=1 // pred_region
      %367 = dma.done [#allocation4], 128
    $region21: #{ultimus_forward.1} parent=1 // pred_fallthru
      _
    %368 = vsyncpa [#allocation3], 1
    %369 = vsyncpa [#allocation4], 1

</llo_original>
